<compile_context>
chip_gen: v7x
topology: tpu7x:2x2x1
jax: 0.10.0
libtpu: 0.0.40
codegen_flags: <defaults>
</compile_context>

<pallas_src>
import functools
import math

import jax
import jax.numpy as jnp
from jax import lax
from jax.experimental import pallas as pl
from jax.experimental.pallas import tpu as pltpu

SQRT_2_OVER_PI = math.sqrt(2.0 / math.pi)
C1 = SQRT_2_OVER_PI
C2 = SQRT_2_OVER_PI * 0.044715

LANES = 128          # vreg lane width; last block dim.
TM_MAX = 4096        # rows per block: 4096 * 128 * 4 B = 2 MiB per f32 buffer.
MIN_BLOCKS = 4       # keep >= 4 grid steps so v7x can shard across 2 TCs.

# Irwin-Hall(4) over bytes {0..255}: mean / std used to standardize the sum.
_IH4_MEAN = 4 * 255.0 / 2.0
_IH4_STD = math.sqrt(4.0 * (256.0 ** 2 - 1.0) / 12.0)


def _lowbias32(x):
    """Good-avalanche 32-bit integer hash (pure VPU ops, any backend)."""
    x = x ^ (x >> 16)
    x = x * jnp.uint32(0x7FEB352D)
    x = x ^ (x >> 15)
    x = x * jnp.uint32(0x846CA68B)
    x = x ^ (x >> 16)
    return x


def _gauss_eps(idx_u32, seed_u32, sigma):
    """sigma * approx-N(0,1) noise from a counter-based hash (VPU only).

    One hash per element; its four bytes are summed (Irwin-Hall K=4) and
    standardized.  sigma and the standardization are folded into one
    mul + add per element.
    """
    h = _lowbias32(idx_u32 + seed_u32)
    byte = jnp.uint32(0xFF)
    s = ((h & byte) + ((h >> 8) & byte)) + (((h >> 16) & byte) + (h >> 24))
    scale = jnp.float32(sigma / _IH4_STD)
    shift = jnp.float32(-_IH4_MEAN * sigma / _IH4_STD)
    return s.astype(jnp.float32) * scale + shift


def _tanh_gelu(xm):
    # Factored polynomial: inner = xm * (c1 + c2 * xm^2).
    inner = xm * (jnp.float32(C1) + jnp.float32(C2) * (xm * xm))
    return 0.5 * xm * (1.0 + jnp.tanh(inner))


def _rgelu_noise_kernel(alpha_ref, seed_ref, x_ref, o_ref, *, sigma, tm):
    # alpha_ref: SMEM f32[1]; seed_ref: SMEM u32[1] (pre-mixed seed);
    # x_ref / o_ref: VMEM (tm, 128) tiles.
    x = x_ref[...]
    # Global linear element index -> noise independent of tiling / megacore.
    r = lax.broadcasted_iota(jnp.uint32, x.shape, 0)
    c = lax.broadcasted_iota(jnp.uint32, x.shape, 1)
    base = (pl.program_id(0) * tm).astype(jnp.uint32)
    idx = ((base + r) << 7) | c          # row * 128 + lane  (LANES == 1 << 7)
    eps = _gauss_eps(idx, seed_ref[0], sigma)
    xm = alpha_ref[0] * x + eps
    o_ref[...] = _tanh_gelu(xm)


def _rgelu_det_kernel(alpha_ref, x_ref, o_ref):
    # sigma == 0 fast path: no PRNG work at all, purely HBM-streaming bound.
    o_ref[...] = _tanh_gelu(alpha_ref[0] * x_ref[...])


def _choose_tiling(rows):
    """Row-tile size and grid length for the (rows, 128) slab."""
    if rows <= 8:
        return rows, 1                       # full-extent block is always legal
    nblocks = max(MIN_BLOCKS, pl.cdiv(rows, TM_MAX))
    tm = pl.cdiv(rows, nblocks)
    tm = min(TM_MAX, max(8, ((tm + 7) // 8) * 8))
    return tm, pl.cdiv(rows, tm)


def rgelu(x, alpha, seed, *, sigma=0.1):
    """Randomized GELU forward.

    x:     float array, any shape (e.g. NCHW).
    alpha: learnable scale, shape (1,) (or scalar).
    seed:  int seed for the in-kernel noise (vary per training step!).
    sigma: static noise std-dev (module default 0.1).
    """
    orig_shape = x.shape
    x = jnp.asarray(x, jnp.float32)
    n = x.size

    alpha = jnp.asarray(alpha, dtype=jnp.float32).reshape(1)
    sigma = float(sigma)
    use_noise = sigma != 0.0

    seed_mixed = None
    if use_noise:
        seed_u = jnp.asarray(seed, dtype=jnp.int32).astype(jnp.uint32).reshape(())
        seed_mixed = _lowbias32(seed_u + jnp.uint32(0x9E3779B9))

    xf = x.reshape(-1)                      # contiguous reshape: free
    rows = n // LANES
    rem = n - rows * LANES

    parts = []

    if rows > 0:
        x_main = xf[: rows * LANES].reshape(rows, LANES)   # identity when rem == 0
        tm, nblocks = _choose_tiling(rows)
        grid = (nblocks,)

        if use_noise:
            kernel = functools.partial(_rgelu_noise_kernel, sigma=sigma, tm=tm)
            in_specs = [
                pl.BlockSpec(memory_space=pltpu.MemorySpace.SMEM),   # alpha
                pl.BlockSpec(memory_space=pltpu.MemorySpace.SMEM),   # seed (mixed)
                pl.BlockSpec((tm, LANES), lambda i: (i, 0)),         # x
            ]
            args = (alpha, seed_mixed.reshape(1), x_main)
        else:
            kernel = _rgelu_det_kernel
            in_specs = [
                pl.BlockSpec(memory_space=pltpu.MemorySpace.SMEM),   # alpha
                pl.BlockSpec((tm, LANES), lambda i: (i, 0)),         # x
            ]
            args = (alpha, x_main)

        out_main = pl.pallas_call(
            kernel,
            out_shape=jax.ShapeDtypeStruct((rows, LANES), jnp.float32),
            grid_spec=pltpu.PrefetchScalarGridSpec(
                num_scalar_prefetch=0,
                grid=grid,
                in_specs=in_specs,
                out_specs=pl.BlockSpec((tm, LANES), lambda i: (i, 0)),
            ),
            compiler_params=pltpu.CompilerParams(
                dimension_semantics=("parallel",),
                vmem_limit_bytes=32 * 1024 * 1024,
            ),
        )(*args)
        parts.append(out_main.reshape(-1))

    if rem > 0:
        # <128-element remainder: same math in plain jnp (same noise stream,
        # indices continue from the main slab).  Avoids a full pad/unpad copy.
        x_tail = xf[rows * LANES:]
        if use_noise:
            idx_tail = (jnp.arange(rem, dtype=jnp.int32)
                        + rows * LANES).astype(jnp.uint32)
            xm_tail = alpha[0] * x_tail + _gauss_eps(idx_tail, seed_mixed, sigma)
        else:
            xm_tail = alpha[0] * x_tail
        parts.append(_tanh_gelu(xm_tail))

    out = parts[0] if len(parts) == 1 else jnp.concatenate(parts)
    return out.reshape(orig_shape)


def gelu_tanh_reference(x):
    """Deterministic tanh-approx GELU (the sigma=0 limit of RGELU)."""
    return 0.5 * x * (1.0 + jnp.tanh(SQRT_2_OVER_PI * (x + 0.044715 * x ** 3)))


if __name__ == "__main__":
    key = jax.random.PRNGKey(0)
    kx, kb, kc = jax.random.split(key, 3)

    # Small NCHW input consistent with the module's usage.
    x = jax.random.normal(kx, (2, 4, 16, 16), dtype=jnp.float32)
    alpha = jnp.ones((1,), dtype=jnp.float32)   # nn.Parameter(torch.ones(1))

    # 1) sigma = 0 fast path: must match the deterministic tanh-GELU.
    out0 = jax.block_until_ready(rgelu(x, alpha, seed=0, sigma=0.0))
    ref0 = gelu_tanh_reference(alpha[0] * x)
    assert out0.shape == x.shape and out0.dtype == jnp.float32
    assert jnp.allclose(out0, ref0, atol=2e-5, rtol=2e-5)

    # 2) sigma = 0.1 (module default): in-kernel hash noise (different RNG
    #    stream than torch.randn), so check sanity / statistics.
    out1 = jax.block_until_ready(rgelu(x, alpha, seed=123, sigma=0.1))
    assert out1.shape == x.shape and out1.dtype == jnp.float32
    assert bool(jnp.all(jnp.isfinite(out1)))
    diff = out1 - ref0
    assert float(jnp.max(jnp.abs(diff))) > 0.0     # noise was actually applied
    assert float(jnp.max(jnp.abs(diff))) < 1.0     # bounded by ~|gelu'| * |eps|
    assert abs(float(jnp.mean(diff))) < 0.05       # roughly zero-mean noise

    #    Different seeds must give different noise.
    out2 = jax.block_until_ready(rgelu(x, alpha, seed=124, sigma=0.1))
    assert float(jnp.max(jnp.abs(out2 - out1))) > 0.0

    # 3) Multi-block grid path (>= MIN_BLOCKS tiles) and non-unit alpha,
    #    deterministic via sigma = 0.
    xb = jax.random.normal(kb, (5, 16, 64, 64), dtype=jnp.float32)   # 2560 rows
    alpha_b = jnp.full((1,), 1.37, dtype=jnp.float32)
    outb = jax.block_until_ready(rgelu(xb, alpha_b, seed=7, sigma=0.0))
    refb = gelu_tanh_reference(alpha_b[0] * xb)
    assert jnp.allclose(outb, refb, atol=2e-5, rtol=2e-5)

    # 4) n % 128 != 0: kernel on the main slab + jnp tail, no padding copies.
    xc = jax.random.normal(kc, (2, 4, 33), dtype=jnp.float32)        # 264 elems
    outc = jax.block_until_ready(rgelu(xc, alpha, seed=3, sigma=0.0))
    refc = gelu_tanh_reference(alpha[0] * xc)
    assert jnp.allclose(outc, refc, atol=2e-5, rtol=2e-5)
    outc1 = jax.block_until_ready(rgelu(xc, alpha, seed=3, sigma=0.1))
    assert bool(jnp.all(jnp.isfinite(outc1)))

    print("KERNEL_OK")
</pallas_src>

<mosaic_0001>
module attributes {stable_mosaic.version = 11 : i64} {
  func.func @_rgelu_det_kernel(%arg0: i32, %arg1: memref<1xf32, #tpu.memory_space<smem>>, %arg2: memref<8x128xf32, #tpu.memory_space<vmem>>, %arg3: memref<8x128xf32, #tpu.memory_space<vmem>>) attributes {dimension_semantics = [#tpu.dimension_semantics<parallel>], iteration_bounds = array<i64: 2>, scalar_prefetch = 0 : i64, scratch_operands = 0 : i64, tpu.core_type = #tpu.core_type<tc>, window_params = [{transform_indices = @transform_0, window_bounds = array<i64: 1>}, {transform_indices = @transform_1, window_bounds = array<i64: 8, 128>}, {transform_indices = @transform_2, window_bounds = array<i64: 8, 128>}]} {
    %c0 = arith.constant 0 : index
    %0 = memref.load %arg1[%c0] : memref<1xf32, #tpu.memory_space<smem>>
    %c0_0 = arith.constant 0 : index
    %c0_1 = arith.constant 0 : index
    %1 = vector.load %arg2[%c0_0, %c0_1] : memref<8x128xf32, #tpu.memory_space<vmem>>, vector<8x128xf32>
    %2 = vector.broadcast %0 : f32 to vector<8x128xf32>
    %3 = arith.mulf %2, %1 : vector<8x128xf32>
    %4 = arith.mulf %3, %3 : vector<8x128xf32>
    %cst = arith.constant 0.0356774069 : f32
    %5 = vector.broadcast %cst : f32 to vector<8x128xf32>
    %6 = arith.mulf %5, %4 : vector<8x128xf32>
    %cst_2 = arith.constant 0.797884583 : f32
    %7 = vector.broadcast %cst_2 : f32 to vector<8x128xf32>
    %8 = arith.addf %7, %6 : vector<8x128xf32>
    %9 = arith.mulf %3, %8 : vector<8x128xf32>
    %cst_3 = arith.constant 5.000000e-01 : f32
    %10 = vector.broadcast %cst_3 : f32 to vector<8x128xf32>
    %11 = arith.mulf %10, %3 : vector<8x128xf32>
    %12 = math.tanh %9 : vector<8x128xf32>
    %cst_4 = arith.constant 1.000000e+00 : f32
    %13 = vector.broadcast %cst_4 : f32 to vector<8x128xf32>
    %14 = arith.addf %13, %12 : vector<8x128xf32>
    %15 = arith.mulf %11, %14 : vector<8x128xf32>
    %c0_5 = arith.constant 0 : index
    %c0_6 = arith.constant 0 : index
    %16 = vector.load %arg3[%c0_5, %c0_6] : memref<8x128xf32, #tpu.memory_space<vmem>>, vector<8x128xf32>
    tpu.vector_store %arg3[%c0_5, %c0_6], %15 {strides = array<i32>} : memref<8x128xf32, #tpu.memory_space<vmem>>, vector<8x128xf32>,
    return
  }
  func.func @transform_0(%arg0: i32) -> i32 {
    %c0_i32 = arith.constant 0 : i32
    %c0_i32_0 = arith.constant 0 : i32
    return %c0_i32 : i32
  }
  func.func @transform_1(%arg0: i32) -> (i32, i32) {
    %c0_i32 = arith.constant 0 : i32
    %c0_i32_0 = arith.constant 0 : i32
    return %arg0, %c0_i32 : i32, i32
  }
  func.func @transform_2(%arg0: i32) -> (i32, i32) {
    %c0_i32 = arith.constant 0 : i32
    %c0_i32_0 = arith.constant 0 : i32
    return %arg0, %c0_i32 : i32, i32
  }
}

</mosaic_0001>

<llo_original>
// kernel: tpu_custom_call.1
$region0: #{tpu_custom_call.1}
  #allocation0 [shape = 'u32[]', space=smem, size = 0x4, offset = 0x4, fixed_abs, tag = 'smem constant byte address 0x4 - core index']
  #allocation1 [shape = 'u32[144,128]{1,0:T(1,128)}', space=vmem, size = 0x12000, scoped, tag = 'internal scratch']
  #allocation2 [shape = 'f32[1]{0:T(128)S(6)}', space=smem, size = 0x200, scoped, tag = 'scoped memory for tpu_custom_call.1']
  %s0 = inlined_call_operand.<no memory space> [shape: f32[1], index: 0, kind: input, shape index: {}]
  %s1 = inlined_call_operand.hbm [shape: f32[16,128], index: 1, kind: input, shape index: {}]
  %s2 = inlined_call_operand.hbm [shape: f32[16,128], index: 2, kind: output, shape index: {}]
  %s3 = sld [smem:[#allocation0]]
  $region45: #{tpu_custom_call.1} parent=0
    _
  %s5 = ssub.s32 1, %s3
  %s6 = scalar_select 0, %s5, %s3
  %7 = sst [smem:[#allocation2]] %s0
  $region1: #{tpu_custom_call.1} parent=0
    #allocation3 [shape = 'u8[8192]{0}', space=vmem, size = 0x2000, scoped, tag = 'input window, operand 1']
    #allocation4 [shape = 's32[2]{0}', space=sflag, size = 0x8, scoped, tag = 'scoped memory for tpu_custom_call.1']
    #allocation5 [shape = 's32[2]{0}', space=sflag, size = 0x8, scoped, tag = 'scoped memory for tpu_custom_call.1']
    #allocation6 [shape = 'u8[8192]{0}', space=vmem, size = 0x2000, scoped, tag = 'output window, operand 0']
    %8 = vsyncpa [#allocation4], 0
    %s9 = scalar_lea.sflag [#allocation4], 1
    %10 = vsyncpa %s9, 0
    %11 = vsyncpa [#allocation5], 0
    %s12 = scalar_lea.sflag [#allocation5], 1
    %13 = vsyncpa %s12, 0
    loop: start=0, step=1, limit=4
    $region2: #{tpu_custom_call.1} parent=1 // loop_pre_header
      _
    $region3: #{tpu_custom_call.1} parent=1 // loop_header
      %s15 = sphi 0, %s19
      %p16 = scmp.ge.s32.totalorder %s15, 4
      %s23 = sphi 0, %s23
      %s25 = sphi 0, %s23
      %s26 = sphi 0, %s25
      %s40 = sphi 0, %s26
      %s46 = sphi 0, %s48
      %s49 = sphi 0, %s46
      %s50 = sphi 0, %s49
      %s66 = sphi 0, %s50
      %s72 = sphi 0, %s74
      %s75 = sphi 0, %s72
      %s76 = sphi 0, %s75
      %s92 = sphi 0, %s76
    $region4: #{tpu_custom_call.1} parent=1 // loop_header_branch
      %18 = sbr.rel (%p16) target = $region8
    $region5: #{tpu_custom_call.1} parent=1 // loop_body
      %s20 = ssub.s32 %s15, 1
      %s21 = ssub.s32 %s15, 2
      %s22 = sadd.s32 %s15, 1
      %s24 = sadd.s32 %s23, 1
      %p27 = scmp.eq.s32.totalorder %s15, 1
      %p28 = scmp.ne.s32.totalorder %s23, %s25
      %p29 = scmp.eq.s32.totalorder %s15, 0
      %p30 = por %p28, %p29
      %p31 = scmp.ne.s32.totalorder %s23, %s25
      %p32 = scmp.eq.s32.totalorder %s20, 1
      %p33 = por %p31, %p32
      %p34 = scmp.ne.s32.totalorder %s25, %s26
      %p35 = scmp.eq.s32.totalorder %s20, 0
      %p36 = por %p34, %p35
      %p37 = scmp.ne.s32.totalorder %s25, %s26
      %p38 = scmp.eq.s32.totalorder %s21, 1
      %p39 = por %p37, %p38
      %p41 = scmp.ne.s32.totalorder %s26, %s40
      %p42 = scmp.eq.s32.totalorder %s21, 0
      %p43 = por %p41, %p42
      %s44 = ssub.s32 %s15, %s22
      %p45 = scmp.eq.s32.totalorder %s44, 0
      %s47 = sadd.s32 %s46, 1
      %s48 = scalar_select %p45, %s46, %s47
      %p51 = pneg %p45
      %p52 = scmp.eq.s32.totalorder %s15, 1
      %p53 = por %p51, %p52
      %p54 = scmp.ne.s32.totalorder %s46, %s49
      %p55 = scmp.eq.s32.totalorder %s15, 0
      %p56 = por %p54, %p55
      %p57 = scmp.ne.s32.totalorder %s46, %s49
      %p58 = scmp.eq.s32.totalorder %s20, 1
      %p59 = por %p57, %p58
      %p60 = scmp.ne.s32.totalorder %s49, %s50
      %p61 = scmp.eq.s32.totalorder %s20, 0
      %p62 = por %p60, %p61
      %p63 = scmp.ne.s32.totalorder %s49, %s50
      %p64 = scmp.eq.s32.totalorder %s21, 1
      %p65 = por %p63, %p64
      %p67 = scmp.ne.s32.totalorder %s50, %s66
      %p68 = scmp.eq.s32.totalorder %s21, 0
      %p69 = por %p67, %p68
      %s70 = ssub.s32 %s15, %s22
      %p71 = scmp.eq.s32.totalorder %s70, 0
      %s73 = sadd.s32 %s72, 1
      %s74 = scalar_select %p71, %s72, %s73
      %p77 = pneg %p71
      %p78 = scmp.eq.s32.totalorder %s15, 1
      %p79 = por %p77, %p78
      %p80 = scmp.ne.s32.totalorder %s72, %s75
      %p81 = scmp.eq.s32.totalorder %s15, 0
      %p82 = por %p80, %p81
      %p83 = scmp.ne.s32.totalorder %s72, %s75
      %p84 = scmp.eq.s32.totalorder %s20, 1
      %p85 = por %p83, %p84
      %p86 = scmp.ne.s32.totalorder %s75, %s76
      %p87 = scmp.eq.s32.totalorder %s20, 0
      %p88 = por %p86, %p87
      %p89 = scmp.ne.s32.totalorder %s75, %s76
      %p90 = scmp.eq.s32.totalorder %s21, 1
      %p91 = por %p89, %p90
      %p93 = scmp.ne.s32.totalorder %s76, %s92
      %p94 = scmp.eq.s32.totalorder %s21, 0
      %p95 = por %p93, %p94
      %p96 = scmp.le.s32.totalorder 1, %s15
      %p97 = scmp.lt.s32.totalorder %s15, 3
      %p98 = pnand %p96, %p97
      %p99 = pneg %p98
      // Predicated region
      $region9: #{tpu_custom_call.1} parent=5 // pred_check
        _
      $region10: #{tpu_custom_call.1} parent=5 // pred_check_branch
        %101 = sbr.rel (%p98) target = $region12
      $region11: #{tpu_custom_call.1} parent=5 // pred_region
        %s102 = ssub.s32 %s15, 1
        // Predicated region
        $region13: #{tpu_custom_call.1} parent=11 // pred_check
          %p103 = pneg %p36
        $region14: #{tpu_custom_call.1} parent=11 // pred_check_branch
          %105 = sbr.rel (%p103) target = $region16
        $region15: #{tpu_custom_call.1} parent=11 // pred_region
          _
        $region16: #{tpu_custom_call.1} parent=11 // pred_fallthru
          _
      $region12: #{tpu_custom_call.1} parent=5 // pred_fallthru
        _
      %p106 = scmp.lt.s32.totalorder %s15, 2
      // Predicated region
      $region17: #{tpu_custom_call.1} parent=5 // pred_check
        %p107 = pneg %p106
      $region18: #{tpu_custom_call.1} parent=5 // pred_check_branch
        %109 = sbr.rel (%p107) target = $region20
      $region19: #{tpu_custom_call.1} parent=5 // pred_region
        // Predicated region
        $region21: #{tpu_custom_call.1} parent=19 // pred_check
          %p110 = pneg %p56
        $region22: #{tpu_custom_call.1} parent=19 // pred_check_branch
          %112 = sbr.rel (%p110) target = $region24
        $region23: #{tpu_custom_call.1} parent=19 // pred_region
          %s113 = sand.u32 %s46, 1
          %s114 = scalar_lea.sflag [#allocation4], %s113
          %s115 = sand.u32 %s46, 1
          %s116 = smul.addr %s115, 8
          %s117 = scalar_lea.vmem [#allocation3], %s116
          %s119 = ssub.s32 128, 128
          %120 = vsyncadd %s114, %s119
          %s121 = smul.addr %s15, 128
          %s122 = scalar_lea.hbm %s1, %s121
          %s124 = sshll.u32 %s117, 4
          %s125 = int_to_ptr.vmem [resolvable:$true] %s124
          %127 = dma.hbm_to_vmem [thread:$0]  %s122, 128, %s125, %s114
        $region24: #{tpu_custom_call.1} parent=19 // pred_fallthru
          _
      $region20: #{tpu_custom_call.1} parent=5 // pred_fallthru
        _
      %p128 = scmp.le.s32.totalorder 1, %s15
      %p129 = scmp.lt.s32.totalorder %s15, 3
      %p130 = pnand %p128, %p129
      %p131 = pneg %p130
      // Predicated region
      $region25: #{tpu_custom_call.1} parent=5 // pred_check
        _
      $region26: #{tpu_custom_call.1} parent=5 // pred_check_branch
        %133 = sbr.rel (%p130) target = $region28
      $region27: #{tpu_custom_call.1} parent=5 // pred_region
        %s134 = ssub.s32 %s15, 1
        %s135 = sand.u32 %s49, 1
        %s136 = scalar_lea.sflag [#allocation4], %s135
        %s137 = sand.u32 %s49, 1
        %s138 = smul.addr %s137, 8
        %s139 = scalar_lea.vmem [#allocation3], %s138
        // Predicated region
        $region29: #{tpu_custom_call.1} parent=27 // pred_check
          %p140 = pneg %p62
        $region30: #{tpu_custom_call.1} parent=27 // pred_check_branch
          %142 = sbr.rel (%p140) target = $region32
        $region31: #{tpu_custom_call.1} parent=27 // pred_region
          %143 = dma.done %s136, 128
        $region32: #{tpu_custom_call.1} parent=27 // pred_fallthru
          _
        %p144 = pneg %p36
        %p145 = pneg %p33
        %s146 = sand.u32 %s49, 1
        %s147 = scalar_lea.sflag [#allocation4], %s146
        %s148 = sand.u32 %s49, 1
        %s149 = smul.addr %s148, 8
        %s150 = scalar_lea.vmem [#allocation3], %s149
        %p151 = pneg %p62
        %p152 = pneg %p59
        %p153 = pneg %p88
        %p154 = pneg %p85
        %s155 = sand.u32 %s75, 1
        %s156 = scalar_lea.sflag [#allocation5], %s155
        %s157 = sand.u32 %s75, 1
        %s158 = smul.addr %s157, 8
        %s159 = scalar_lea.vmem [#allocation6], %s158
        %s160 = sld [smem:[#allocation2]]
        %v161 = vld [vmem:[%s139] sm:$0xff]
        %v162 = vstv %s160
        %v163 = vmul.f32 %v162, %v161
        %v164 = vmul.f32 %v163, %v163
        %v165 = vmul.f32 %v164, 0.035677407
        %v166 = vadd.f32 %v165, 0.7978846
        %v167 = vmul.f32 %v163, %v166
        %v168 = vmul.f32 %v163, 0.5
        %v169 = vtanh.pop %v167
        %v170 = vadd.f32 %v169, 1.0
        %v171 = vmul.f32 %v168, %v170
        %172 = vst [vmem:[%s159] sm:$0xff] %v171
        %s173 = sand.u32 %s75, 1
        %s174 = scalar_lea.sflag [#allocation5], %s173
        %s175 = sand.u32 %s75, 1
        %s176 = smul.addr %s175, 8
        %s177 = scalar_lea.vmem [#allocation6], %s176
        // Predicated region
        $region33: #{tpu_custom_call.1} parent=27 // pred_check
          %p178 = pneg %p85
        $region34: #{tpu_custom_call.1} parent=27 // pred_check_branch
          %180 = sbr.rel (%p178) target = $region36
        $region35: #{tpu_custom_call.1} parent=27 // pred_region
          %s182 = ssub.s32 128, 128
          %183 = vsyncadd %s174, %s182
          %s184 = smul.addr %s20, 128
          %s185 = scalar_lea.hbm %s2, %s184
          %s187 = sshll.u32 %s177, 4
          %s188 = int_to_ptr.vmem [resolvable:$true] %s187
          %190 = dma.vmem_to_hbm [thread:$0]  %s188, 128, %s185, %s174
        $region36: #{tpu_custom_call.1} parent=27 // pred_fallthru
          _
      $region28: #{tpu_custom_call.1} parent=5 // pred_fallthru
        _
      %p191 = scmp.le.s32.totalorder 2, %s15
      // Predicated region
      $region37: #{tpu_custom_call.1} parent=5 // pred_check
        %p192 = pneg %p191
      $region38: #{tpu_custom_call.1} parent=5 // pred_check_branch
        %194 = sbr.rel (%p192) target = $region40
      $region39: #{tpu_custom_call.1} parent=5 // pred_region
        %s195 = ssub.s32 %s15, 2
        // Predicated region
        $region41: #{tpu_custom_call.1} parent=39 // pred_check
          %p196 = pneg %p91
        $region42: #{tpu_custom_call.1} parent=39 // pred_check_branch
          %198 = sbr.rel (%p196) target = $region44
        $region43: #{tpu_custom_call.1} parent=39 // pred_region
          %s199 = sand.u32 %s76, 1
          %s200 = scalar_lea.sflag [#allocation5], %s199
          %s201 = sand.u32 %s76, 1
          %s202 = smul.addr %s201, 8
          %s203 = scalar_lea.vmem [#allocation6], %s202
          %204 = dma.done %s200, 128
        $region44: #{tpu_custom_call.1} parent=39 // pred_fallthru
          _
      $region40: #{tpu_custom_call.1} parent=5 // pred_fallthru
        _
    $region6: #{tpu_custom_call.1} parent=1 // loop_footer
      %s19 = sadd.s32 1, %s15
    $region7: #{tpu_custom_call.1} parent=1 // loop_footer_branch
      %14 = sbr.rel target = $region3
    $region8: #{tpu_custom_call.1} parent=1 // loop_exit
      _
    %205 = vsyncpa [#allocation4], 1
    %s206 = scalar_lea.sflag [#allocation4], 1
    %207 = vsyncpa %s206, 1
    %208 = vsyncpa [#allocation5], 1
    %s209 = scalar_lea.sflag [#allocation5], 1
    %210 = vsyncpa %s209, 1

</llo_original>
